<compile_context>
chip_gen: v7x
topology: tpu7x:2x2x1
jax: 0.10.0
libtpu: 0.0.40
codegen_flags: <defaults>
</compile_context>

<pallas_src>
import functools
import math

import jax
import jax.numpy as jnp
from jax import lax
from jax.experimental import pallas as pl
from jax.experimental.pallas import tpu as pltpu


# Murmur3 / splitmix constants expressed as int32 (two's complement).
_MIX1 = -2048144789   # 0x85EBCA6B
_MIX2 = -1028477387   # 0xC2B2AE35
_GOLD = -1640531527   # 0x9E3779B9


def _hash_bits_int32(idx, seed):
    """Stateless counter-based hash -> ~uniform int32 bits.

    Pure int32 arithmetic (mul/xor/logical shifts), so it lowers both on Mosaic
    and in CPU interpret mode, unlike the stateful pltpu.prng_* primitives.
    """
    h = idx * jnp.int32(_GOLD) + seed
    h = h ^ lax.shift_right_logical(h, jnp.int32(16))
    h = h * jnp.int32(_MIX1)
    h = h ^ lax.shift_right_logical(h, jnp.int32(13))
    h = h * jnp.int32(_MIX2)
    h = h ^ lax.shift_right_logical(h, jnp.int32(16))
    return h


def _pos_enc_dropout_kernel(seed_ref, x_ref, pe_ref, o_ref, *, dropout_p, seq_len):
    # x_ref / o_ref: (tS, D)  (batch dim squeezed away by the BlockSpec)
    # pe_ref       : (tS, D)  shared positional-encoding tile
    y = x_ref[...] + pe_ref[...]            # compute in the input dtype, no f32 round-trip

    if dropout_p > 0.0:                     # trace-time fast path for eval mode (p == 0)
        s = pl.program_id(0)                # seq-tile index (outer grid axis)
        b = pl.program_id(1)                # batch index   (inner grid axis)
        tS, D = x_ref.shape
        rows = lax.broadcasted_iota(jnp.int32, (tS, D), 0)
        cols = lax.broadcasted_iota(jnp.int32, (tS, D), 1)
        # Globally unique per-element counter: unique per (batch, seq position, lane),
        # independent of the tiling -> identical mask for any tile size.
        idx = (b * seq_len + s * tS + rows) * D + cols
        bits = _hash_bits_int32(idx, seed_ref[0])
        # keep with prob (1 - p): uniform int32 >= round(p * 2^32) - 2^31
        thresh = jnp.int32(int(round(dropout_p * (1 << 32))) - (1 << 31))
        keep = bits >= thresh
        scale = jnp.asarray(1.0 / (1.0 - dropout_p), dtype=y.dtype)
        y = jnp.where(keep, y * scale, jnp.zeros_like(y))

    o_ref[...] = y


def make_pos_encoding_table(embedding_dim, max_len=512, dtype=jnp.float32):
    """Mirror of the PyTorch __init__ buffer, shape (max_len, embedding_dim)."""
    positions = jnp.arange(0, max_len, dtype=jnp.float32)[:, None]          # (L, 1)
    division_term = jnp.exp(
        jnp.arange(0, embedding_dim, 2, dtype=jnp.float32)
        * (-math.log(10000.0) / embedding_dim)
    )                                                                        # (D/2,)
    angles = positions * division_term                                       # (L, D/2)
    pe = jnp.zeros((max_len, embedding_dim), dtype=jnp.float32)
    pe = pe.at[:, 0::2].set(jnp.sin(angles))
    pe = pe.at[:, 1::2].set(jnp.cos(angles))
    return pe.astype(dtype)


def _choose_seq_tile(S, D, itemsize, vmem_budget_bytes):
    """Largest seq tile (multiple of 8, divides S) whose ~6 live buffers
    (double-buffered x, out, pe) fit the budget; fall back to full S."""
    for cand in (2048, 1024, 512, 256, 128, 64, 32, 16, 8):
        if cand <= S and S % cand == 0 and 6 * cand * D * itemsize <= vmem_budget_bytes:
            return cand
    return S   # full extent is always a legal block shape


def positional_encoding_forward(token_embedding, pos_encoding_table,
                                dropout_p=0.1, seed=0):
    """token_embedding: (B, S, D); pos_encoding_table: (max_len, D)."""
    B, S, D = token_embedding.shape
    pe = pos_encoding_table[:S, :].astype(token_embedding.dtype)   # [:, :seq_len, :]
    # TODO(synk): if D is not a multiple of 128, pad/fold to a lane-dense last dim
    # before the pallas_call to avoid masked partial stores.

    tS = _choose_seq_tile(S, D, token_embedding.dtype.itemsize,
                          vmem_budget_bytes=24 * 1024 * 1024)
    num_s = S // tS
    seed_arr = jnp.array([seed], dtype=jnp.int32)

    kernel = functools.partial(_pos_enc_dropout_kernel,
                               dropout_p=float(dropout_p), seq_len=S)

    return pl.pallas_call(
        kernel,
        out_shape=jax.ShapeDtypeStruct((B, S, D), token_embedding.dtype),
        grid_spec=pltpu.PrefetchScalarGridSpec(
            num_scalar_prefetch=1,
            # seq-tile axis OUTER, batch INNER: the PE tile's block index only
            # depends on the outer axis, so it is not re-DMA'd per batch element.
            grid=(num_s, B),
            in_specs=[
                pl.BlockSpec((None, tS, D), lambda s, b, seed: (b, s, 0)),  # x
                pl.BlockSpec((tS, D), lambda s, b, seed: (s, 0)),           # pe
            ],
            out_specs=pl.BlockSpec((None, tS, D), lambda s, b, seed: (b, s, 0)),
        ),
        compiler_params=pltpu.CompilerParams(
            # Stateless hash PRNG -> every grid step is independent: both axes
            # parallel (lets v7x shard across its 2 TensorCores).
            dimension_semantics=("parallel", "parallel"),
            vmem_limit_bytes=64 * 1024 * 1024,
        ),
    )(seed_arr, token_embedding, pe)


if __name__ == "__main__":
    # Small shapes consistent with the module: (batch, seq_len, embedding_dim)
    B, S, D = 2, 8, 128
    max_len = 512
    dropout_p = 0.1

    key = jax.random.PRNGKey(0)
    token_embedding = jax.random.normal(key, (B, S, D), dtype=jnp.float32)

    pe_table = make_pos_encoding_table(D, max_len=max_len)

    # Training-mode forward (dropout active).
    out = positional_encoding_forward(token_embedding, pe_table,
                                      dropout_p=dropout_p, seed=0)
    out = jax.block_until_ready(out)

    # Sanity: non-dropped entries equal (x + pe) / (1 - p).
    expected = (token_embedding + pe_table[None, :S, :]) / (1.0 - dropout_p)
    kept = out != 0.0
    assert out.shape == (B, S, D)
    assert jnp.allclose(jnp.where(kept, out, 0.0),
                        jnp.where(kept, expected, 0.0), atol=1e-5)

    # Eval-mode fast path (p = 0): exact broadcast add.
    out_eval = positional_encoding_forward(token_embedding, pe_table,
                                           dropout_p=0.0, seed=0)
    out_eval = jax.block_until_ready(out_eval)
    assert jnp.allclose(out_eval, token_embedding + pe_table[None, :S, :], atol=1e-6)

    print("KERNEL_OK")
</pallas_src>

<mosaic_0001>
module attributes {stable_mosaic.version = 11 : i64} {
  func.func @_pos_enc_dropout_kernel(%arg0: i32, %arg1: i32, %arg2: memref<1xi32, #tpu.memory_space<smem>>, %arg3: memref<1x8x128xf32, #tpu.memory_space<vmem>>, %arg4: memref<8x128xf32, #tpu.memory_space<vmem>>, %arg5: memref<1x8x128xf32, #tpu.memory_space<vmem>>) attributes {dimension_semantics = [#tpu.dimension_semantics<parallel>, #tpu.dimension_semantics<parallel>], iteration_bounds = array<i64: 1, 2>, scalar_prefetch = 1 : i64, scratch_operands = 0 : i64, tpu.core_type = #tpu.core_type<tc>, window_params = [{transform_indices = @transform_0, window_bounds = array<i64: 1, 8, 128>}, {transform_indices = @transform_1, window_bounds = array<i64: 8, 128>}, {transform_indices = @transform_2, window_bounds = array<i64: 1, 8, 128>}]} {
    %c0 = arith.constant 0 : index
    %c0_0 = arith.constant 0 : index
    %c0_1 = arith.constant 0 : index
    %0 = vector.load %arg3[%c0, %c0_0, %c0_1] : memref<1x8x128xf32, #tpu.memory_space<vmem>>, vector<1x8x128xf32>
    %1 = vector.shape_cast %0 : vector<1x8x128xf32> to vector<8x128xf32>
    %c0_2 = arith.constant 0 : index
    %c0_3 = arith.constant 0 : index
    %2 = vector.load %arg4[%c0_2, %c0_3] : memref<8x128xf32, #tpu.memory_space<vmem>>, vector<8x128xf32>
    %3 = arith.addf %1, %2 : vector<8x128xf32>
    %4 = tpu.iota {dimensions = array<i32: 0>} : vector<8x128xi32>
    %5 = tpu.iota {dimensions = array<i32: 1>} : vector<8x128xi32>
    %c8_i32 = arith.constant 8 : i32
    %6 = arith.muli %arg1, %c8_i32 : i32
    %c8_i32_4 = arith.constant 8 : i32
    %7 = arith.muli %arg0, %c8_i32_4 : i32
    %8 = arith.addi %6, %7 : i32
    %9 = vector.broadcast %8 : i32 to vector<8x128xi32>
    %10 = arith.addi %9, %4 : vector<8x128xi32>
    %c128_i32 = arith.constant 128 : i32
    %11 = vector.broadcast %c128_i32 : i32 to vector<8x128xi32>
    %12 = arith.muli %10, %11 : vector<8x128xi32>
    %13 = arith.addi %12, %5 : vector<8x128xi32>
    %c0_5 = arith.constant 0 : index
    %14 = memref.load %arg2[%c0_5] : memref<1xi32, #tpu.memory_space<smem>>
    %c-1640531527_i32 = arith.constant -1640531527 : i32
    %15 = vector.broadcast %c-1640531527_i32 : i32 to vector<8x128xi32>
    %16 = arith.muli %13, %15 : vector<8x128xi32>
    %17 = vector.broadcast %14 : i32 to vector<8x128xi32>
    %18 = arith.addi %16, %17 : vector<8x128xi32>
    %c16_i32 = arith.constant 16 : i32
    %19 = vector.broadcast %c16_i32 : i32 to vector<8x128xi32>
    %20 = arith.shrui %18, %19 : vector<8x128xi32>
    %21 = arith.xori %18, %20 : vector<8x128xi32>
    %c-2048144789_i32 = arith.constant -2048144789 : i32
    %22 = vector.broadcast %c-2048144789_i32 : i32 to vector<8x128xi32>
    %23 = arith.muli %21, %22 : vector<8x128xi32>
    %c13_i32 = arith.constant 13 : i32
    %24 = vector.broadcast %c13_i32 : i32 to vector<8x128xi32>
    %25 = arith.shrui %23, %24 : vector<8x128xi32>
    %26 = arith.xori %23, %25 : vector<8x128xi32>
    %c-1028477387_i32 = arith.constant -1028477387 : i32
    %27 = vector.broadcast %c-1028477387_i32 : i32 to vector<8x128xi32>
    %28 = arith.muli %26, %27 : vector<8x128xi32>
    %c16_i32_6 = arith.constant 16 : i32
    %29 = vector.broadcast %c16_i32_6 : i32 to vector<8x128xi32>
    %30 = arith.shrui %28, %29 : vector<8x128xi32>
    %31 = arith.xori %28, %30 : vector<8x128xi32>
    %c-1717986918_i32 = arith.constant -1717986918 : i32
    %32 = vector.broadcast %c-1717986918_i32 : i32 to vector<8x128xi32>
    %33 = arith.cmpi sge, %31, %32 : vector<8x128xi32>
    %cst = arith.constant 1.11111116 : f32
    %34 = vector.broadcast %cst : f32 to vector<8x128xf32>
    %35 = arith.mulf %3, %34 : vector<8x128xf32>
    %cst_7 = arith.constant 0.000000e+00 : f32
    %36 = vector.broadcast %cst_7 : f32 to vector<8x128xf32>
    %37 = arith.select %33, %35, %36 : vector<8x128xi1>, vector<8x128xf32>
    %c0_8 = arith.constant 0 : index
    %c0_9 = arith.constant 0 : index
    %c0_10 = arith.constant 0 : index
    %38 = vector.load %arg5[%c0_8, %c0_9, %c0_10] : memref<1x8x128xf32, #tpu.memory_space<vmem>>, vector<1x8x128xf32>
    %39 = vector.shape_cast %38 : vector<1x8x128xf32> to vector<8x128xf32>
    %40 = vector.shape_cast %37 : vector<8x128xf32> to vector<1x8x128xf32>
    tpu.vector_store %arg5[%c0_8, %c0_9, %c0_10], %40 {strides = array<i32>} : memref<1x8x128xf32, #tpu.memory_space<vmem>>, vector<1x8x128xf32>,
    return
  }
  func.func @transform_0(%arg0: i32, %arg1: i32, %arg2: memref<1xi32, #tpu.memory_space<smem>>) -> (i32, i32, i32) {
    %c0_i32 = arith.constant 0 : i32
    %c0_i32_0 = arith.constant 0 : i32
    return %arg1, %arg0, %c0_i32 : i32, i32, i32
  }
  func.func @transform_1(%arg0: i32, %arg1: i32, %arg2: memref<1xi32, #tpu.memory_space<smem>>) -> (i32, i32) {
    %c0_i32 = arith.constant 0 : i32
    %c0_i32_0 = arith.constant 0 : i32
    return %arg0, %c0_i32 : i32, i32
  }
  func.func @transform_2(%arg0: i32, %arg1: i32, %arg2: memref<1xi32, #tpu.memory_space<smem>>) -> (i32, i32, i32) {
    %c0_i32 = arith.constant 0 : i32
    %c0_i32_0 = arith.constant 0 : i32
    return %arg1, %arg0, %c0_i32 : i32, i32, i32
  }
}

</mosaic_0001>

<llo_original>
// kernel: tpu_custom_call.1
$region0: #{tpu_custom_call.1}
  #allocation0 [shape = 'u32[]', space=smem, size = 0x4, offset = 0x4, fixed_abs, tag = 'smem constant byte address 0x4 - core index']
  #allocation1 [shape = 'u32[144,128]{1,0:T(1,128)}', space=vmem, size = 0x12000, scoped, tag = 'internal scratch']
  #allocation2 [shape = 's32[1]{0}', space=sflag, size = 0x4, scoped, tag = 'scoped memory for tpu_custom_call.1']
  #allocation3 [shape = 's32[1]{0:T(128)S(6)}', space=smem, size = 0x200, scoped, tag = 'prefetched SMEM operand 0']
  %s0 = inlined_call_operand.<no memory space> [shape: s32[1], index: 0, kind: input, shape index: {}]
  %s1 = inlined_call_operand.hbm [shape: f32[2,8,128], index: 1, kind: input, shape index: {}]
  %s2 = inlined_call_operand.hbm [shape: f32[8,128], index: 2, kind: input, shape index: {}]
  %s3 = inlined_call_operand.hbm [shape: f32[2,8,128], index: 3, kind: output, shape index: {}]
  %s4 = sld [smem:[#allocation0]]
  $region49: #{tpu_custom_call.1} parent=0
    _
  %s6 = ssub.s32 1, %s4
  %s7 = scalar_select 0, %s6, %s4
  %8 = sst [smem:[#allocation3]] %s0
  $region1: #{tpu_custom_call.1} parent=0
    #allocation4 [shape = 'u8[8192]{0}', space=vmem, size = 0x2000, scoped, tag = 'input window, operand 1']
    #allocation5 [shape = 's32[2]{0}', space=sflag, size = 0x8, scoped, tag = 'scoped memory for tpu_custom_call.1']
    #allocation6 [shape = 's32[2]{0}', space=sflag, size = 0x8, scoped, tag = 'scoped memory for tpu_custom_call.1']
    #allocation7 [shape = 'u8[4096]{0}', space=vmem, size = 0x1000, scoped, tag = 'input window, operand 2, single buffered']
    #allocation8 [shape = 's32[1]{0}', space=sflag, size = 0x4, scoped, tag = 'scoped memory for tpu_custom_call.1']
    #allocation9 [shape = 'u8[8192]{0}', space=vmem, size = 0x2000, scoped, tag = 'output window, operand 0']
    %9 = vsyncpa [#allocation5], 0
    %s10 = scalar_lea.sflag [#allocation5], 1
    %11 = vsyncpa %s10, 0
    %12 = vsyncpa [#allocation8], 0
    %13 = vsyncpa [#allocation6], 0
    %s14 = scalar_lea.sflag [#allocation6], 1
    %15 = vsyncpa %s14, 0
    loop: start=0, step=1, limit=4
    $region2: #{tpu_custom_call.1} parent=1 // loop_pre_header
      _
    $region3: #{tpu_custom_call.1} parent=1 // loop_header
      %s17 = sphi 0, %s21
      %p18 = scmp.ge.s32.totalorder %s17, 4
      %s24 = sphi 0, %s36
      %s25 = sphi 0, %s32
      %s26 = sphi 0, %s24
      %s27 = sphi 0, %s25
      %s28 = sphi 0, %s26
      %s29 = sphi 0, %s27
      %s41 = sphi 0, %s43
      %s44 = sphi 0, %s41
      %s45 = sphi 0, %s44
      %s61 = sphi 0, %s45
      %s67 = sphi 0, %s69
      %s70 = sphi 0, %s67
      %s71 = sphi 0, %s70
      %s87 = sphi 0, %s71
      %s95 = sphi 0, %s97
      %s98 = sphi 0, %s95
      %s99 = sphi 0, %s98
      %s115 = sphi 0, %s99
    $region4: #{tpu_custom_call.1} parent=1 // loop_header_branch
      %20 = sbr.rel (%p18) target = $region8
    $region5: #{tpu_custom_call.1} parent=1 // loop_body
      %s22 = ssub.s32 %s17, 1
      %s23 = ssub.s32 %s17, 2
      %s30 = sadd.s32 1, %s25
      %p31 = scmp.ge.s32.totalorder %s30, 2
      %s32 = scalar_select %p31, 0, %s30
      %s33 = sadd.s32 1, %s24
      %s34 = scalar_select %p31, %s33, %s24
      %p35 = scmp.ge.s32.totalorder %s34, 1
      %s36 = scalar_select %p35, 0, %s34
      %s37 = ssub.s32 %s25, %s32
      %s38 = ssub.s32 %s24, %s36
      %s39 = sor.u32 %s37, %s38
      %p40 = scmp.eq.s32.totalorder %s39, 0
      %s42 = sadd.s32 %s41, 1
      %s43 = scalar_select %p40, %s41, %s42
      %p46 = pneg %p40
      %p47 = scmp.eq.s32.totalorder %s17, 1
      %p48 = por %p46, %p47
      %p49 = scmp.ne.s32.totalorder %s41, %s44
      %p50 = scmp.eq.s32.totalorder %s17, 0
      %p51 = por %p49, %p50
      %p52 = scmp.ne.s32.totalorder %s41, %s44
      %p53 = scmp.eq.s32.totalorder %s22, 1
      %p54 = por %p52, %p53
      %p55 = scmp.ne.s32.totalorder %s44, %s45
      %p56 = scmp.eq.s32.totalorder %s22, 0
      %p57 = por %p55, %p56
      %p58 = scmp.ne.s32.totalorder %s44, %s45
      %p59 = scmp.eq.s32.totalorder %s23, 1
      %p60 = por %p58, %p59
      %p62 = scmp.ne.s32.totalorder %s45, %s61
      %p63 = scmp.eq.s32.totalorder %s23, 0
      %p64 = por %p62, %p63
      %s65 = ssub.s32 %s24, %s36
      %p66 = scmp.eq.s32.totalorder %s65, 0
      %s68 = sadd.s32 %s67, 1
      %s69 = scalar_select %p66, %s67, %s68
      %p72 = pneg %p66
      %p73 = scmp.eq.s32.totalorder %s17, 1
      %p74 = por %p72, %p73
      %p75 = scmp.ne.s32.totalorder %s67, %s70
      %p76 = scmp.eq.s32.totalorder %s17, 0
      %p77 = por %p75, %p76
      %p78 = scmp.ne.s32.totalorder %s67, %s70
      %p79 = scmp.eq.s32.totalorder %s22, 1
      %p80 = por %p78, %p79
      %p81 = scmp.ne.s32.totalorder %s70, %s71
      %p82 = scmp.eq.s32.totalorder %s22, 0
      %p83 = por %p81, %p82
      %p84 = scmp.ne.s32.totalorder %s70, %s71
      %p85 = scmp.eq.s32.totalorder %s23, 1
      %p86 = por %p84, %p85
      %p88 = scmp.ne.s32.totalorder %s71, %s87
      %p89 = scmp.eq.s32.totalorder %s23, 0
      %p90 = por %p88, %p89
      %s91 = ssub.s32 %s25, %s32
      %s92 = ssub.s32 %s24, %s36
      %s93 = sor.u32 %s91, %s92
      %p94 = scmp.eq.s32.totalorder %s93, 0
      %s96 = sadd.s32 %s95, 1
      %s97 = scalar_select %p94, %s95, %s96
      %p100 = pneg %p94
      %p101 = scmp.eq.s32.totalorder %s17, 1
      %p102 = por %p100, %p101
      %p103 = scmp.ne.s32.totalorder %s95, %s98
      %p104 = scmp.eq.s32.totalorder %s17, 0
      %p105 = por %p103, %p104
      %p106 = scmp.ne.s32.totalorder %s95, %s98
      %p107 = scmp.eq.s32.totalorder %s22, 1
      %p108 = por %p106, %p107
      %p109 = scmp.ne.s32.totalorder %s98, %s99
      %p110 = scmp.eq.s32.totalorder %s22, 0
      %p111 = por %p109, %p110
      %p112 = scmp.ne.s32.totalorder %s98, %s99
      %p113 = scmp.eq.s32.totalorder %s23, 1
      %p114 = por %p112, %p113
      %p116 = scmp.ne.s32.totalorder %s99, %s115
      %p117 = scmp.eq.s32.totalorder %s23, 0
      %p118 = por %p116, %p117
      %p119 = scmp.le.s32.totalorder 1, %s17
      %p120 = scmp.lt.s32.totalorder %s17, 3
      %p121 = pnand %p119, %p120
      %p122 = pneg %p121
      // Predicated region
      $region9: #{tpu_custom_call.1} parent=5 // pred_check
        _
      $region10: #{tpu_custom_call.1} parent=5 // pred_check_branch
        %124 = sbr.rel (%p121) target = $region12
      $region11: #{tpu_custom_call.1} parent=5 // pred_region
        %s125 = ssub.s32 %s17, 1
        // Predicated region
        $region13: #{tpu_custom_call.1} parent=11 // pred_check
          %p126 = pneg %p83
        $region14: #{tpu_custom_call.1} parent=11 // pred_check_branch
          %128 = sbr.rel (%p126) target = $region16
        $region15: #{tpu_custom_call.1} parent=11 // pred_region
          %s130 = ssub.s32 128, 128
          %131 = vsyncadd [#allocation8], %s130
          %s132 = smul.addr %s26, 128
          %s133 = scalar_lea.hbm %s2, %s132
          %s135 = sshll.u32 [#allocation7], 4
          %s136 = int_to_ptr.vmem [resolvable:$true] %s135
          %138 = dma.hbm_to_vmem [thread:$0]  %s133, 128, %s136, [#allocation8]
        $region16: #{tpu_custom_call.1} parent=11 // pred_fallthru
          _
      $region12: #{tpu_custom_call.1} parent=5 // pred_fallthru
        _
      %p139 = scmp.lt.s32.totalorder %s17, 2
      // Predicated region
      $region17: #{tpu_custom_call.1} parent=5 // pred_check
        %p140 = pneg %p139
      $region18: #{tpu_custom_call.1} parent=5 // pred_check_branch
        %142 = sbr.rel (%p140) target = $region20
      $region19: #{tpu_custom_call.1} parent=5 // pred_region
        // Predicated region
        $region21: #{tpu_custom_call.1} parent=19 // pred_check
          %p143 = pneg %p51
        $region22: #{tpu_custom_call.1} parent=19 // pred_check_branch
          %145 = sbr.rel (%p143) target = $region24
        $region23: #{tpu_custom_call.1} parent=19 // pred_region
          %s146 = sand.u32 %s41, 1
          %s147 = scalar_lea.sflag [#allocation5], %s146
          %s148 = sand.u32 %s41, 1
          %s149 = smul.addr %s148, 8
          %s150 = scalar_lea.vmem [#allocation4], %s149
          %s152 = ssub.s32 128, 128
          %153 = vsyncadd %s147, %s152
          %s154 = sadd.s32 %s24, %s25
          %s155 = smul.addr %s154, 128
          %s156 = scalar_lea.hbm %s1, %s155
          %s158 = sshll.u32 %s150, 4
          %s159 = int_to_ptr.vmem [resolvable:$true] %s158
          %161 = dma.hbm_to_vmem [thread:$0]  %s156, 128, %s159, %s147
        $region24: #{tpu_custom_call.1} parent=19 // pred_fallthru
          _
      $region20: #{tpu_custom_call.1} parent=5 // pred_fallthru
        _
      %p162 = scmp.le.s32.totalorder 1, %s17
      %p163 = scmp.lt.s32.totalorder %s17, 3
      %p164 = pnand %p162, %p163
      %p165 = pneg %p164
      // Predicated region
      $region25: #{tpu_custom_call.1} parent=5 // pred_check
        _
      $region26: #{tpu_custom_call.1} parent=5 // pred_check_branch
        %167 = sbr.rel (%p164) target = $region28
      $region27: #{tpu_custom_call.1} parent=5 // pred_region
        %s168 = ssub.s32 %s17, 1
        %s169 = sand.u32 %s44, 1
        %s170 = scalar_lea.sflag [#allocation5], %s169
        %s171 = sand.u32 %s44, 1
        %s172 = smul.addr %s171, 8
        %s173 = scalar_lea.vmem [#allocation4], %s172
        // Predicated region
        $region29: #{tpu_custom_call.1} parent=27 // pred_check
          %p174 = pneg %p57
        $region30: #{tpu_custom_call.1} parent=27 // pred_check_branch
          %176 = sbr.rel (%p174) target = $region32
        $region31: #{tpu_custom_call.1} parent=27 // pred_region
          %177 = dma.done %s170, 128
        $region32: #{tpu_custom_call.1} parent=27 // pred_fallthru
          _
        // Predicated region
        $region33: #{tpu_custom_call.1} parent=27 // pred_check
          %p178 = pneg %p83
        $region34: #{tpu_custom_call.1} parent=27 // pred_check_branch
          %180 = sbr.rel (%p178) target = $region36
        $region35: #{tpu_custom_call.1} parent=27 // pred_region
          %181 = dma.done [#allocation8], 128
        $region36: #{tpu_custom_call.1} parent=27 // pred_fallthru
          _
        %s182 = sand.u32 %s44, 1
        %s183 = scalar_lea.sflag [#allocation5], %s182
        %s184 = sand.u32 %s44, 1
        %s185 = smul.addr %s184, 8
        %s186 = scalar_lea.vmem [#allocation4], %s185
        %p187 = pneg %p57
        %p188 = pneg %p54
        %p189 = pneg %p83
        %p190 = pneg %p80
        %p191 = pneg %p111
        %p192 = pneg %p108
        %s193 = sand.u32 %s98, 1
        %s194 = scalar_lea.sflag [#allocation6], %s193
        %s195 = sand.u32 %s98, 1
        %s196 = smul.addr %s195, 8
        %s197 = scalar_lea.vmem [#allocation9], %s196
        %v198 = vld [vmem:[%s173] sm:$0xff]
        %v199 = vld [vmem:[#allocation7] sm:$0xff]
        %v200 = vadd.f32 %v198, %v199
        %v201 = vlaneseq
        %v202 = vshrl.u32 %v201, 7
        %v203 = vlaneseq
        %v204 = vand.u32 %v203, 127
        %s205 = smul.u32 %s27, 8
        %s206 = smul.u32 %s26, 8
        %s207 = sadd.s32 %s205, %s206
        %v208 = vstv %s207
        %v209 = vadd.s32 %v208, %v202
        %v210 = vmul.u32 %v209, 128
        %v211 = vadd.s32 %v210, %v204
        %s212 = sld [smem:[#allocation3]]
        %v213 = vmul.u32 %v211, 2654435769
        %v214 = vstv %s212
        %v215 = vadd.s32 %v213, %v214
        %v216 = vshrl.u32 %v215, 16
        %v217 = vxor.u32 %v215, %v216
        %v218 = vmul.u32 %v217, 2246822507
        %v219 = vshrl.u32 %v218, 13
        %v220 = vxor.u32 %v218, %v219
        %v221 = vmul.u32 %v220, 3266489909
        %v222 = vshrl.u32 %v221, 16
        %v223 = vxor.u32 %v221, %v222
        %vm224 = vcmp.ge.s32.totalorder %v223, 2576980378
        %v225 = vmul.f32 %v200, 1.1111112
        %v226 = vsel %vm224, %v225, 0.0
        %227 = vst [vmem:[%s197] sm:$0xff] %v226
        %s228 = sand.u32 %s98, 1
        %s229 = scalar_lea.sflag [#allocation6], %s228
        %s230 = sand.u32 %s98, 1
        %s231 = smul.addr %s230, 8
        %s232 = scalar_lea.vmem [#allocation9], %s231
        // Predicated region
        $region37: #{tpu_custom_call.1} parent=27 // pred_check
          %p233 = pneg %p108
        $region38: #{tpu_custom_call.1} parent=27 // pred_check_branch
          %235 = sbr.rel (%p233) target = $region40
        $region39: #{tpu_custom_call.1} parent=27 // pred_region
          %s237 = ssub.s32 128, 128
          %238 = vsyncadd %s229, %s237
          %s239 = sadd.s32 %s26, %s27
          %s240 = smul.addr %s239, 128
          %s241 = scalar_lea.hbm %s3, %s240
          %s243 = sshll.u32 %s232, 4
          %s244 = int_to_ptr.vmem [resolvable:$true] %s243
          %246 = dma.vmem_to_hbm [thread:$0]  %s244, 128, %s241, %s229
        $region40: #{tpu_custom_call.1} parent=27 // pred_fallthru
          _
      $region28: #{tpu_custom_call.1} parent=5 // pred_fallthru
        _
      %p247 = scmp.le.s32.totalorder 2, %s17
      // Predicated region
      $region41: #{tpu_custom_call.1} parent=5 // pred_check
        %p248 = pneg %p247
      $region42: #{tpu_custom_call.1} parent=5 // pred_check_branch
        %250 = sbr.rel (%p248) target = $region44
      $region43: #{tpu_custom_call.1} parent=5 // pred_region
        %s251 = ssub.s32 %s17, 2
        // Predicated region
        $region45: #{tpu_custom_call.1} parent=43 // pred_check
          %p252 = pneg %p114
        $region46: #{tpu_custom_call.1} parent=43 // pred_check_branch
          %254 = sbr.rel (%p252) target = $region48
        $region47: #{tpu_custom_call.1} parent=43 // pred_region
          %s255 = sand.u32 %s99, 1
          %s256 = scalar_lea.sflag [#allocation6], %s255
          %s257 = sand.u32 %s99, 1
          %s258 = smul.addr %s257, 8
          %s259 = scalar_lea.vmem [#allocation9], %s258
          %260 = dma.done %s256, 128
        $region48: #{tpu_custom_call.1} parent=43 // pred_fallthru
          _
      $region44: #{tpu_custom_call.1} parent=5 // pred_fallthru
        _
    $region6: #{tpu_custom_call.1} parent=1 // loop_footer
      %s21 = sadd.s32 1, %s17
    $region7: #{tpu_custom_call.1} parent=1 // loop_footer_branch
      %16 = sbr.rel target = $region3
    $region8: #{tpu_custom_call.1} parent=1 // loop_exit
      _
    %261 = vsyncpa [#allocation5], 1
    %s262 = scalar_lea.sflag [#allocation5], 1
    %263 = vsyncpa %s262, 1
    %264 = vsyncpa [#allocation8], 1
    %265 = vsyncpa [#allocation6], 1
    %s266 = scalar_lea.sflag [#allocation6], 1
    %267 = vsyncpa %s266, 1

</llo_original>
